<compile_context>
chip_gen: v6e
topology: v6e:2x2x1
jax: 0.10.0
libtpu: 0.0.40
codegen_flags: <defaults>
</compile_context>

<pallas_src>
import jax
import jax.numpy as jnp
from jax.experimental import pallas as pl
from jax.experimental.pallas import tpu as pltpu

# true (unpadded) layer widths after __init__ rewrites layers[1]
D_IN, H1, H2, H3, D_OUT = 2, 42, 32, 32, 1
H1P = 48   # H1 padded to a sublane multiple (8); padded rows stay exactly zero


def _round_up(v, m):
    return ((v + m - 1) // m) * m


def _cdiv(a, b):
    return -(-a // b)


def _pad2d(a, rows, cols):
    r, c = a.shape
    return jnp.zeros((rows, cols), a.dtype).at[:r, :c].set(a)


def mlp_kernel(x_ref,
               w1_ref, b1_ref,
               w2_ref, b2_ref,
               w3_ref, b3_ref,
               w4t_ref, b4_ref,
               o_ref):
    """One (2, TN) batch tile (batch on the lane axis) -> lane-dense (1, TN)."""
    x = x_ref[...]                                    # (2, TN)  f32
    w1 = w1_ref[...]                                  # (48, 2)  f32

    # Layer 1: contraction K == 2 -> VPU broadcast multiply-adds (MXU stays free).
    h = (w1[:, 0:1] * x[0:1, :]
         + w1[:, 1:2] * x[1:2, :]
         + b1_ref[...])                               # (48, TN)
    h = jnp.maximum(h, 0.0)

    # Layers 2-3: MXU, bf16 operands (16 K-rows per slab) with f32 accumulation.
    # Zero-padded w1/b1 rows make padded h rows exactly 0, and the padded
    # (bf16) w2 columns are 0, so the padding contributes nothing.
    h = jnp.dot(w2_ref[...], h.astype(jnp.bfloat16),
                preferred_element_type=jnp.float32) + b2_ref[...]   # (32, TN)
    h = jnp.maximum(h, 0.0)
    h = jnp.dot(w3_ref[...], h.astype(jnp.bfloat16),
                preferred_element_type=jnp.float32) + b3_ref[...]   # (32, TN)
    h = jnp.maximum(h, 0.0)

    # Layer 4: only one real output row -> VPU multiply + XLU sublane reduction
    # instead of spending MXU pushes on an (8,32)x(32,TN) matmul.
    y = jnp.sum(w4t_ref[...] * h, axis=0, keepdims=True) + b4_ref[...]  # (1, TN)
    o_ref[...] = y.astype(o_ref.dtype)                 # lane-dense (1, TN) store


def _pick_tile(n):
    """Lanes per grid step (multiple of 128).

    n < 4096  -> one grid step (don't pay the ~0.35us per-step overhead twice).
    n >= 4096 -> >=2 steps of 2048..8192 lanes each: per-step overhead drops to
    a few percent and v7x's two TensorCores both get compute-dominated work.
    """
    n128 = _round_up(max(n, 1), 128)
    if n128 < 4096:
        return n128
    steps = max(2, _cdiv(n128, 8192))
    return _round_up(_cdiv(n128, steps), 128)


@jax.jit
def low_dim_mlp_forward(x, params):
    """x: (N, 2). params: list of (W, b) in PyTorch Linear layout W:(out,in),
    b:(out,). Returns (N,) — matches LowDimMLP.forward(x).squeeze()."""
    n = x.shape[0]
    tn = _pick_tile(n)
    n_pad = _round_up(n, tn)

    # batch-on-lanes input (2, n_pad); pad only when n is not a tile multiple
    xf = x.astype(jnp.float32)
    if n == n_pad:
        xt = xf.T
    else:
        xt = jnp.zeros((D_IN, n_pad), jnp.float32).at[:, :n].set(xf.T)

    (w1, b1), (w2, b2), (w3, b3), (w4, b4) = params
    consts = [
        _pad2d(w1.astype(jnp.float32), H1P, D_IN),                     # (48, 2)  f32
        _pad2d(b1.astype(jnp.float32)[:, None], H1P, 1),               # (48, 1)  f32
        _pad2d(w2.astype(jnp.float32), H2, H1P).astype(jnp.bfloat16),  # (32, 48) bf16
        b2.astype(jnp.float32)[:, None],                               # (32, 1)  f32
        w3.astype(jnp.bfloat16),                                       # (32, 32) bf16
        b3.astype(jnp.float32)[:, None],                               # (32, 1)  f32
        w4.astype(jnp.float32).T,                                      # (32, 1)  f32
        b4.astype(jnp.float32)[:, None],                               # (1, 1)   f32
    ]
    # full-array blocks with constant index_map -> fetched once, VMEM-resident
    const_specs = [pl.BlockSpec(c.shape, lambda i: (0, 0)) for c in consts]

    out = pl.pallas_call(
        mlp_kernel,
        out_shape=jax.ShapeDtypeStruct((1, n_pad), jnp.float32),
        grid_spec=pltpu.PrefetchScalarGridSpec(
            num_scalar_prefetch=0,
            grid=(n_pad // tn,),
            in_specs=[pl.BlockSpec((D_IN, tn), lambda i: (0, i))] + const_specs,
            out_specs=pl.BlockSpec((1, tn), lambda i: (0, i)),
        ),
        compiler_params=pltpu.CompilerParams(
            dimension_semantics=("parallel",),
            # let XLA fuse the wrapper-side transpose/pad into the x operand
            allow_input_fusion=[True] + [False] * len(consts),
            # explicit headroom so the larger tiles compile on v5e's 16 MiB default
            vmem_limit_bytes=32 * 1024 * 1024,
        ),
    )(xt, *consts)

    # row 0 holds the real outputs; drop batch padding; squeeze() -> (N,)
    return out[0, :n]


def init_params(key):
    """Deterministic init mimicking torch.nn.Linear default: U(-k, k), k=1/sqrt(fan_in)."""
    dims = [(D_IN, H1), (H1, H2), (H2, H3), (H3, D_OUT)]
    params = []
    for din, dout in dims:
        key, kw, kb = jax.random.split(key, 3)
        bound = 1.0 / jnp.sqrt(jnp.float32(din))
        w = jax.random.uniform(kw, (dout, din), jnp.float32, -bound, bound)
        b = jax.random.uniform(kb, (dout,), jnp.float32, -bound, bound)
        params.append((w, b))
    return params


def reference_forward(x, params):
    """Strict-f32 reference of the PyTorch module."""
    h = x.astype(jnp.float32)
    for idx, (w, b) in enumerate(params):
        h = jnp.dot(h, w.T, precision=jax.lax.Precision.HIGHEST) + b
        if idx < len(params) - 1:
            h = jnp.maximum(h, 0.0)
    return jnp.squeeze(h)


if __name__ == "__main__":
    key = jax.random.PRNGKey(0)
    key, kx = jax.random.split(key)

    N = 256   # small batch -> single 256-lane grid step (no forced split)
    x = jax.random.normal(kx, (N, D_IN), jnp.float32)
    params = init_params(key)

    out = jax.block_until_ready(low_dim_mlp_forward(x, params))
    ref = reference_forward(x, params)

    assert out.shape == (N,), out.shape
    max_err = float(jnp.max(jnp.abs(out - ref)))
    # Layers 2-3 use bf16 operands with f32 accumulation (per the perf review),
    # so compare against the strict-f32 reference with a loosened tolerance.
    assert jnp.allclose(out, ref, atol=5e-2, rtol=5e-2), max_err

    print("KERNEL_OK")
</pallas_src>

<mosaic_0001>
module attributes {stable_mosaic.version = 11 : i64} {
  func.func @mlp_kernel(%arg0: i32, %arg1: memref<2x256xf32, #tpu.memory_space<vmem>>, %arg2: memref<48x2xf32, #tpu.memory_space<vmem>>, %arg3: memref<48x1xf32, #tpu.memory_space<vmem>>, %arg4: memref<32x48xbf16, #tpu.memory_space<vmem>>, %arg5: memref<32x1xf32, #tpu.memory_space<vmem>>, %arg6: memref<32x32xbf16, #tpu.memory_space<vmem>>, %arg7: memref<32x1xf32, #tpu.memory_space<vmem>>, %arg8: memref<32x1xf32, #tpu.memory_space<vmem>>, %arg9: memref<1x1xf32, #tpu.memory_space<vmem>>, %arg10: memref<1x256xf32, #tpu.memory_space<vmem>>) attributes {dimension_semantics = [#tpu.dimension_semantics<parallel>], iteration_bounds = array<i64: 1>, scalar_prefetch = 0 : i64, scratch_operands = 0 : i64, tpu.core_type = #tpu.core_type<tc>, window_params = [{transform_indices = @transform_0, window_bounds = array<i64: 2, 256>}, {pipeline_mode = #tpu.pipeline_mode<synchronous>, transform_indices = @transform_1, window_bounds = array<i64: 48, 2>}, {pipeline_mode = #tpu.pipeline_mode<synchronous>, transform_indices = @transform_2, window_bounds = array<i64: 48, 1>}, {pipeline_mode = #tpu.pipeline_mode<synchronous>, transform_indices = @transform_3, window_bounds = array<i64: 32, 48>}, {pipeline_mode = #tpu.pipeline_mode<synchronous>, transform_indices = @transform_4, window_bounds = array<i64: 32, 1>}, {pipeline_mode = #tpu.pipeline_mode<synchronous>, transform_indices = @transform_5, window_bounds = array<i64: 32, 32>}, {pipeline_mode = #tpu.pipeline_mode<synchronous>, transform_indices = @transform_6, window_bounds = array<i64: 32, 1>}, {pipeline_mode = #tpu.pipeline_mode<synchronous>, transform_indices = @transform_7, window_bounds = array<i64: 32, 1>}, {pipeline_mode = #tpu.pipeline_mode<synchronous>, transform_indices = @transform_8, window_bounds = array<i64: 1, 1>}, {transform_indices = @transform_9, window_bounds = array<i64: 1, 256>}]} {
    %c0 = arith.constant 0 : index
    %c0_0 = arith.constant 0 : index
    %0 = vector.load %arg1[%c0, %c0_0] : memref<2x256xf32, #tpu.memory_space<vmem>>, vector<2x256xf32>
    %c0_1 = arith.constant 0 : index
    %c0_2 = arith.constant 0 : index
    %1 = vector.load %arg2[%c0_1, %c0_2] : memref<48x2xf32, #tpu.memory_space<vmem>>, vector<48x2xf32>
    %2 = vector.extract_strided_slice %1 {offsets = [0, 0], sizes = [48, 1], strides = [1, 1]} : vector<48x2xf32> to vector<48x1xf32>
    %3 = vector.extract_strided_slice %0 {offsets = [0, 0], sizes = [1, 256], strides = [1, 1]} : vector<2x256xf32> to vector<1x256xf32>
    %4 = vector.broadcast %2 : vector<48x1xf32> to vector<48x256xf32>
    %5 = vector.broadcast %3 : vector<1x256xf32> to vector<48x256xf32>
    %6 = arith.mulf %4, %5 : vector<48x256xf32>
    %7 = vector.extract_strided_slice %1 {offsets = [0, 1], sizes = [48, 1], strides = [1, 1]} : vector<48x2xf32> to vector<48x1xf32>
    %8 = vector.extract_strided_slice %0 {offsets = [1, 0], sizes = [1, 256], strides = [1, 1]} : vector<2x256xf32> to vector<1x256xf32>
    %9 = vector.broadcast %7 : vector<48x1xf32> to vector<48x256xf32>
    %10 = vector.broadcast %8 : vector<1x256xf32> to vector<48x256xf32>
    %11 = arith.mulf %9, %10 : vector<48x256xf32>
    %12 = arith.addf %6, %11 : vector<48x256xf32>
    %c0_3 = arith.constant 0 : index
    %c0_4 = arith.constant 0 : index
    %13 = vector.load %arg3[%c0_3, %c0_4] : memref<48x1xf32, #tpu.memory_space<vmem>>, vector<48x1xf32>
    %14 = vector.broadcast %13 : vector<48x1xf32> to vector<48x256xf32>
    %15 = arith.addf %12, %14 : vector<48x256xf32>
    %cst = arith.constant 0.000000e+00 : f32
    %16 = vector.broadcast %cst : f32 to vector<48x256xf32>
    %17 = arith.maximumf %15, %16 : vector<48x256xf32>
    %c0_5 = arith.constant 0 : index
    %c0_6 = arith.constant 0 : index
    %18 = vector.load %arg4[%c0_5, %c0_6] : memref<32x48xbf16, #tpu.memory_space<vmem>>, vector<32x48xbf16>
    %19 = arith.truncf %17 : vector<48x256xf32> to vector<48x256xbf16>
    %cst_7 = arith.constant dense<0.000000e+00> : vector<32x256xf32>
    %20 = tpu.matmul %18, %19, %cst_7 {dimension_numbers = #tpu.dot_dimension_numbers<[1], [0], [0], [1], [0, 0, 1, 1], [], []>} : vector<32x48xbf16>, vector<48x256xbf16>, vector<32x256xf32> -> vector<32x256xf32>
    %c0_8 = arith.constant 0 : index
    %c0_9 = arith.constant 0 : index
    %21 = vector.load %arg5[%c0_8, %c0_9] : memref<32x1xf32, #tpu.memory_space<vmem>>, vector<32x1xf32>
    %22 = vector.broadcast %21 : vector<32x1xf32> to vector<32x256xf32>
    %23 = arith.addf %20, %22 : vector<32x256xf32>
    %cst_10 = arith.constant 0.000000e+00 : f32
    %24 = vector.broadcast %cst_10 : f32 to vector<32x256xf32>
    %25 = arith.maximumf %23, %24 : vector<32x256xf32>
    %c0_11 = arith.constant 0 : index
    %c0_12 = arith.constant 0 : index
    %26 = vector.load %arg6[%c0_11, %c0_12] : memref<32x32xbf16, #tpu.memory_space<vmem>>, vector<32x32xbf16>
    %27 = arith.truncf %25 : vector<32x256xf32> to vector<32x256xbf16>
    %cst_13 = arith.constant dense<0.000000e+00> : vector<32x256xf32>
    %28 = tpu.matmul %26, %27, %cst_13 {dimension_numbers = #tpu.dot_dimension_numbers<[1], [0], [0], [1], [0, 0, 1, 1], [], []>} : vector<32x32xbf16>, vector<32x256xbf16>, vector<32x256xf32> -> vector<32x256xf32>
    %c0_14 = arith.constant 0 : index
    %c0_15 = arith.constant 0 : index
    %29 = vector.load %arg7[%c0_14, %c0_15] : memref<32x1xf32, #tpu.memory_space<vmem>>, vector<32x1xf32>
    %30 = vector.broadcast %29 : vector<32x1xf32> to vector<32x256xf32>
    %31 = arith.addf %28, %30 : vector<32x256xf32>
    %cst_16 = arith.constant 0.000000e+00 : f32
    %32 = vector.broadcast %cst_16 : f32 to vector<32x256xf32>
    %33 = arith.maximumf %31, %32 : vector<32x256xf32>
    %c0_17 = arith.constant 0 : index
    %c0_18 = arith.constant 0 : index
    %34 = vector.load %arg8[%c0_17, %c0_18] : memref<32x1xf32, #tpu.memory_space<vmem>>, vector<32x1xf32>
    %35 = vector.broadcast %34 : vector<32x1xf32> to vector<32x256xf32>
    %36 = arith.mulf %35, %33 : vector<32x256xf32>
    %cst_19 = arith.constant dense<0.000000e+00> : vector<256xf32>
    %37 = vector.multi_reduction <add>, %36, %cst_19 [0] : vector<32x256xf32> to vector<256xf32>
    %38 = vector.shape_cast %37 : vector<256xf32> to vector<1x256xf32>
    %c0_20 = arith.constant 0 : index
    %c0_21 = arith.constant 0 : index
    %39 = vector.load %arg9[%c0_20, %c0_21] : memref<1x1xf32, #tpu.memory_space<vmem>>, vector<1x1xf32>
    %40 = vector.broadcast %39 : vector<1x1xf32> to vector<1x256xf32>
    %41 = arith.addf %38, %40 : vector<1x256xf32>
    %c0_22 = arith.constant 0 : index
    %c0_23 = arith.constant 0 : index
    %42 = vector.load %arg10[%c0_22, %c0_23] : memref<1x256xf32, #tpu.memory_space<vmem>>, vector<1x256xf32>
    tpu.vector_store %arg10[%c0_22, %c0_23], %41 {strides = array<i32>} : memref<1x256xf32, #tpu.memory_space<vmem>>, vector<1x256xf32>,
    return
  }
  func.func @transform_0(%arg0: i32) -> (i32, i32) {
    %c0_i32 = arith.constant 0 : i32
    %c0_i32_0 = arith.constant 0 : i32
    return %c0_i32, %arg0 : i32, i32
  }
  func.func @transform_1(%arg0: i32) -> (i32, i32) {
    %c0_i32 = arith.constant 0 : i32
    %c0_i32_0 = arith.constant 0 : i32
    %c0_i32_1 = arith.constant 0 : i32
    return %c0_i32, %c0_i32_0 : i32, i32
  }
  func.func @transform_2(%arg0: i32) -> (i32, i32) {
    %c0_i32 = arith.constant 0 : i32
    %c0_i32_0 = arith.constant 0 : i32
    %c0_i32_1 = arith.constant 0 : i32
    return %c0_i32, %c0_i32_0 : i32, i32
  }
  func.func @transform_3(%arg0: i32) -> (i32, i32) {
    %c0_i32 = arith.constant 0 : i32
    %c0_i32_0 = arith.constant 0 : i32
    %c0_i32_1 = arith.constant 0 : i32
    return %c0_i32, %c0_i32_0 : i32, i32
  }
  func.func @transform_4(%arg0: i32) -> (i32, i32) {
    %c0_i32 = arith.constant 0 : i32
    %c0_i32_0 = arith.constant 0 : i32
    %c0_i32_1 = arith.constant 0 : i32
    return %c0_i32, %c0_i32_0 : i32, i32
  }
  func.func @transform_5(%arg0: i32) -> (i32, i32) {
    %c0_i32 = arith.constant 0 : i32
    %c0_i32_0 = arith.constant 0 : i32
    %c0_i32_1 = arith.constant 0 : i32
    return %c0_i32, %c0_i32_0 : i32, i32
  }
  func.func @transform_6(%arg0: i32) -> (i32, i32) {
    %c0_i32 = arith.constant 0 : i32
    %c0_i32_0 = arith.constant 0 : i32
    %c0_i32_1 = arith.constant 0 : i32
    return %c0_i32, %c0_i32_0 : i32, i32
  }
  func.func @transform_7(%arg0: i32) -> (i32, i32) {
    %c0_i32 = arith.constant 0 : i32
    %c0_i32_0 = arith.constant 0 : i32
    %c0_i32_1 = arith.constant 0 : i32
    return %c0_i32, %c0_i32_0 : i32, i32
  }
  func.func @transform_8(%arg0: i32) -> (i32, i32) {
    %c0_i32 = arith.constant 0 : i32
    %c0_i32_0 = arith.constant 0 : i32
    %c0_i32_1 = arith.constant 0 : i32
    return %c0_i32, %c0_i32_0 : i32, i32
  }
  func.func @transform_9(%arg0: i32) -> (i32, i32) {
    %c0_i32 = arith.constant 0 : i32
    %c0_i32_0 = arith.constant 0 : i32
    return %c0_i32, %arg0 : i32, i32
  }
}

</mosaic_0001>

<llo_original>
// kernel: low_dim_mlp_forward.2
$region0: #{low_dim_mlp_forward.2}
  #allocation0 [shape = 'u32[]', space=smem, size = 0x4, offset = 0x4, fixed_abs, tag = 'smem constant byte address 0x4 - core index']
  #allocation1 [shape = 'u32[144,128]{1,0:T(1,128)}', space=vmem, size = 0x12000, scoped, tag = 'internal scratch']
  #allocation2 [shape = 'f32[1,1]{1,0:T(1,128)S(1)}', space=vmem, size = 0x200, scoped, tag = 'scoped memory for low_dim_mlp_forward.2']
  %s0 = inlined_call_operand.vmem [shape: f32[48,2], index: 0, kind: input, shape index: {}]
  %s1 = inlined_call_operand.vmem [shape: f32[48,1], index: 1, kind: input, shape index: {}]
  %s2 = inlined_call_operand.vmem [shape: bf16[32,48], index: 2, kind: input, shape index: {}]
  %s3 = inlined_call_operand.vmem [shape: f32[32,1], index: 3, kind: input, shape index: {}]
  %s4 = inlined_call_operand.vmem [shape: bf16[32,32], index: 4, kind: input, shape index: {}]
  %s5 = inlined_call_operand.vmem [shape: f32[32,1], index: 5, kind: input, shape index: {}]
  %s6 = inlined_call_operand.vmem [shape: f32[32,1], index: 6, kind: input, shape index: {}]
  %s7 = inlined_call_operand.<no memory space> [shape: f32[1,1], index: 7, kind: input, shape index: {}]
  %s8 = inlined_call_operand.vmem [shape: f32[256,2], index: 8, kind: input, shape index: {}]
  %s9 = inlined_call_operand.hbm [shape: f32[1,256], index: 9, kind: output, shape index: {}]
  %s10 = sld [smem:[#allocation0]]
  $region46: #{low_dim_mlp_forward.2} parent=0
    _
  %s12 = ssub.s32 1, %s10
  %s13 = scalar_select 0, %s12, %s10
  %v14 = vstv %s7
  %15 = vst [vmem:[#allocation2] sm:$0x1] %v14
  $region1: #{low_dim_mlp_forward.2} parent=0
    #allocation3 [shape = 'u8[1024]{0}', space=vmem, size = 0x400, scoped, tag = 'output window, operand 0, single buffered']
    #allocation4 [shape = 's32[1]{0}', space=sflag, size = 0x4, scoped, tag = 'scoped memory for low_dim_mlp_forward.2']
    #allocation5 [shape = 'u8[2048]{0}', space=vmem, size = 0x800, dematerialized = true, scoped, tag = 'FusionAdapter Buffer %fusion.1 = f32[2,256]{1,0:T(2,128)} fusion(%param_8.1), kind=kLoop, calls=%fused_computation.2.clone, metadata={op_name="jit(low_dim_mlp_forward)/transpose" stack_frame_id=13}']
    %16 = vsyncpa [#allocation4], 0
    // Predicated region
    $region2: #{low_dim_mlp_forward.2} parent=1 // pred_check
      _
    $region3: #{low_dim_mlp_forward.2} parent=1 // pred_check_branch
      %18 = sbr.rel (0) target = $region5
    $region4: #{low_dim_mlp_forward.2} parent=1 // pred_region
      _
    $region5: #{low_dim_mlp_forward.2} parent=1 // pred_fallthru
      _
    // Predicated region
    $region6: #{low_dim_mlp_forward.2} parent=1 // pred_check
      _
    $region7: #{low_dim_mlp_forward.2} parent=1 // pred_check_branch
      %20 = sbr.rel (0) target = $region9
    $region8: #{low_dim_mlp_forward.2} parent=1 // pred_region
      _
    $region9: #{low_dim_mlp_forward.2} parent=1 // pred_fallthru
      _
    // Predicated region
    $region10: #{low_dim_mlp_forward.2} parent=1 // pred_check
      _
    $region11: #{low_dim_mlp_forward.2} parent=1 // pred_check_branch
      %22 = sbr.rel (0) target = $region13
    $region12: #{low_dim_mlp_forward.2} parent=1 // pred_region
      _
    $region13: #{low_dim_mlp_forward.2} parent=1 // pred_fallthru
      _
    // Predicated region
    $region14: #{low_dim_mlp_forward.2} parent=1 // pred_check
      _
    $region15: #{low_dim_mlp_forward.2} parent=1 // pred_check_branch
      %24 = sbr.rel (0) target = $region17
    $region16: #{low_dim_mlp_forward.2} parent=1 // pred_region
      _
    $region17: #{low_dim_mlp_forward.2} parent=1 // pred_fallthru
      _
    // Predicated region
    $region18: #{low_dim_mlp_forward.2} parent=1 // pred_check
      _
    $region19: #{low_dim_mlp_forward.2} parent=1 // pred_check_branch
      %26 = sbr.rel (0) target = $region21
    $region20: #{low_dim_mlp_forward.2} parent=1 // pred_region
      _
    $region21: #{low_dim_mlp_forward.2} parent=1 // pred_fallthru
      _
    // Predicated region
    $region22: #{low_dim_mlp_forward.2} parent=1 // pred_check
      _
    $region23: #{low_dim_mlp_forward.2} parent=1 // pred_check_branch
      %28 = sbr.rel (0) target = $region25
    $region24: #{low_dim_mlp_forward.2} parent=1 // pred_region
      _
    $region25: #{low_dim_mlp_forward.2} parent=1 // pred_fallthru
      _
    // Predicated region
    $region26: #{low_dim_mlp_forward.2} parent=1 // pred_check
      _
    $region27: #{low_dim_mlp_forward.2} parent=1 // pred_check_branch
      %30 = sbr.rel (0) target = $region29
    $region28: #{low_dim_mlp_forward.2} parent=1 // pred_region
      _
    $region29: #{low_dim_mlp_forward.2} parent=1 // pred_fallthru
      _
    // Predicated region
    $region30: #{low_dim_mlp_forward.2} parent=1 // pred_check
      _
    $region31: #{low_dim_mlp_forward.2} parent=1 // pred_check_branch
      %32 = sbr.rel (0) target = $region33
    $region32: #{low_dim_mlp_forward.2} parent=1 // pred_region
      _
    $region33: #{low_dim_mlp_forward.2} parent=1 // pred_fallthru
      _
    // Predicated region
    $region34: #{low_dim_mlp_forward.2} parent=1 // pred_check
      _
    $region35: #{low_dim_mlp_forward.2} parent=1 // pred_check_branch
      %34 = sbr.rel (0) target = $region37
    $region36: #{low_dim_mlp_forward.2} parent=1 // pred_region
      _
    $region37: #{low_dim_mlp_forward.2} parent=1 // pred_fallthru
      _
    %v35 = vld [vmem:[%s8] sm:$0x3]
    %s37 = ssub.s32 4, 1
    %38 = vst [vmem:[#allocation5] sm:%s37] %v35
    %s39 = scalar_lea.vmem %s8, 2
    %v40 = vld [vmem:[%s39] sm:$0x3]
    %s41 = scalar_lea.vmem [#allocation5], 2
    %s43 = ssub.s32 4, 1
    %44 = vst [vmem:[%s41] sm:%s43] %v40
    %v46 = vld [vmem:[#allocation5] sm:$0xf]
    %v47 = vld [vmem:[%s0] sm:$0xff]
    %v48 = vld [vmem:[%s0 + $0x8] sm:$0xff]
    %v49 = vld [vmem:[%s0 + $0x10] sm:$0xff]
    %v50 = vld [vmem:[%s0 + $0x18] sm:$0xff]
    %v51 = vld [vmem:[%s0 + $0x20] sm:$0xff]
    %v52 = vld [vmem:[%s0 + $0x28] sm:$0xff]
    %54 = vset.pattern.permute.xlu0 0
    %55 = vperm.xlu0 %54, %v47
    %v56 = vpop.permute.xlu0 %55
    %59 = vset.pattern.permute.xlu0 0
    %60 = vperm.xlu0 %59, %v48
    %v61 = vpop.permute.xlu0 %60
    %64 = vset.pattern.permute.xlu0 0
    %65 = vperm.xlu0 %64, %v49
    %v66 = vpop.permute.xlu0 %65
    %69 = vset.pattern.permute.xlu0 0
    %70 = vperm.xlu0 %69, %v50
    %v71 = vpop.permute.xlu0 %70
    %74 = vset.pattern.permute.xlu0 0
    %75 = vperm.xlu0 %74, %v51
    %v76 = vpop.permute.xlu0 %75
    %79 = vset.pattern.permute.xlu0 0
    %80 = vperm.xlu0 %79, %v52
    %v81 = vpop.permute.xlu0 %80
    %v84 = vlaneseq
    %v85 = vshrl.u32 %v84, 7
    %v86 = vsub.s32 0, %v85
    %v87 = vrot.slane %v46, %v86
    %v88 = vlaneseq
    %v89 = vshrl.u32 %v88, 7
    %v90 = vsub.s32 2, %v89
    %v91 = vrot.slane %v46, %v90
    %v94 = vlaneseq
    %v95 = vshrl.u32 %v94, 7
    %v96 = vsub.s32 0, %v95
    %v97 = vrot.slane %v87, %v96
    %v98 = vlaneseq
    %v99 = vshrl.u32 %v98, 7
    %v100 = vsub.s32 0, %v99
    %v101 = vrot.slane %v91, %v100
    %v102 = vmul.f32 %v56, %v97
    %v103 = vmul.f32 %v56, %v101
    %v104 = vmul.f32 %v61, %v97
    %v105 = vmul.f32 %v61, %v101
    %v106 = vmul.f32 %v66, %v97
    %v107 = vmul.f32 %v66, %v101
    %v108 = vmul.f32 %v71, %v97
    %v109 = vmul.f32 %v71, %v101
    %v110 = vmul.f32 %v76, %v97
    %v111 = vmul.f32 %v76, %v101
    %v112 = vmul.f32 %v81, %v97
    %v113 = vmul.f32 %v81, %v101
    %114 = vset.pattern.permute.xlu0 1
    %115 = vperm.xlu0 %114, %v47
    %v116 = vpop.permute.xlu0 %115
    %118 = vset.pattern.permute.xlu0 1
    %119 = vperm.xlu0 %118, %v48
    %v120 = vpop.permute.xlu0 %119
    %122 = vset.pattern.permute.xlu0 1
    %123 = vperm.xlu0 %122, %v49
    %v124 = vpop.permute.xlu0 %123
    %126 = vset.pattern.permute.xlu0 1
    %127 = vperm.xlu0 %126, %v50
    %v128 = vpop.permute.xlu0 %127
    %130 = vset.pattern.permute.xlu0 1
    %131 = vperm.xlu0 %130, %v51
    %v132 = vpop.permute.xlu0 %131
    %134 = vset.pattern.permute.xlu0 1
    %135 = vperm.xlu0 %134, %v52
    %v136 = vpop.permute.xlu0 %135
    %v138 = vlaneseq
    %v139 = vshrl.u32 %v138, 7
    %v140 = vsub.s32 1, %v139
    %v141 = vrot.slane %v46, %v140
    %v142 = vlaneseq
    %v143 = vshrl.u32 %v142, 7
    %v144 = vsub.s32 3, %v143
    %v145 = vrot.slane %v46, %v144
    %v148 = vlaneseq
    %v149 = vshrl.u32 %v148, 7
    %v150 = vsub.s32 1, %v149
    %v151 = vrot.slane %v141, %v150
    %v152 = vlaneseq
    %v153 = vshrl.u32 %v152, 7
    %v154 = vsub.s32 1, %v153
    %v155 = vrot.slane %v145, %v154
    %v156 = vmul.f32 %v116, %v151
    %v157 = vmul.f32 %v116, %v155
    %v158 = vmul.f32 %v120, %v151
    %v159 = vmul.f32 %v120, %v155
    %v160 = vmul.f32 %v124, %v151
    %v161 = vmul.f32 %v124, %v155
    %v162 = vmul.f32 %v128, %v151
    %v163 = vmul.f32 %v128, %v155
    %v164 = vmul.f32 %v132, %v151
    %v165 = vmul.f32 %v132, %v155
    %v166 = vmul.f32 %v136, %v151
    %v167 = vmul.f32 %v136, %v155
    %v168 = vadd.f32 %v102, %v156
    %v169 = vadd.f32 %v103, %v157
    %v170 = vadd.f32 %v104, %v158
    %v171 = vadd.f32 %v105, %v159
    %v172 = vadd.f32 %v106, %v160
    %v173 = vadd.f32 %v107, %v161
    %v174 = vadd.f32 %v108, %v162
    %v175 = vadd.f32 %v109, %v163
    %v176 = vadd.f32 %v110, %v164
    %v177 = vadd.f32 %v111, %v165
    %v178 = vadd.f32 %v112, %v166
    %v179 = vadd.f32 %v113, %v167
    %v180 = vld [vmem:[%s1] sm:$0xff]
    %v181 = vld [vmem:[%s1 + $0x8] sm:$0xff]
    %v182 = vld [vmem:[%s1 + $0x10] sm:$0xff]
    %v183 = vld [vmem:[%s1 + $0x18] sm:$0xff]
    %v184 = vld [vmem:[%s1 + $0x20] sm:$0xff]
    %v185 = vld [vmem:[%s1 + $0x28] sm:$0xff]
    %187 = vset.pattern.permute.xlu0 0
    %188 = vperm.xlu0 %187, %v180
    %v189 = vpop.permute.xlu0 %188
    %192 = vset.pattern.permute.xlu0 0
    %193 = vperm.xlu0 %192, %v181
    %v194 = vpop.permute.xlu0 %193
    %197 = vset.pattern.permute.xlu0 0
    %198 = vperm.xlu0 %197, %v182
    %v199 = vpop.permute.xlu0 %198
    %202 = vset.pattern.permute.xlu0 0
    %203 = vperm.xlu0 %202, %v183
    %v204 = vpop.permute.xlu0 %203
    %207 = vset.pattern.permute.xlu0 0
    %208 = vperm.xlu0 %207, %v184
    %v209 = vpop.permute.xlu0 %208
    %212 = vset.pattern.permute.xlu0 0
    %213 = vperm.xlu0 %212, %v185
    %v214 = vpop.permute.xlu0 %213
    %v216 = vadd.f32 %v168, %v189
    %v217 = vadd.f32 %v169, %v189
    %v218 = vadd.f32 %v170, %v194
    %v219 = vadd.f32 %v171, %v194
    %v220 = vadd.f32 %v172, %v199
    %v221 = vadd.f32 %v173, %v199
    %v222 = vadd.f32 %v174, %v204
    %v223 = vadd.f32 %v175, %v204
    %v224 = vadd.f32 %v176, %v209
    %v225 = vadd.f32 %v177, %v209
    %v226 = vadd.f32 %v178, %v214
    %v227 = vadd.f32 %v179, %v214
    %v228 = vmax.f32 %v216, 0.0
    %v229 = vmax.f32 %v217, 0.0
    %v230 = vmax.f32 %v218, 0.0
    %v231 = vmax.f32 %v219, 0.0
    %v232 = vmax.f32 %v220, 0.0
    %v233 = vmax.f32 %v221, 0.0
    %v234 = vmax.f32 %v222, 0.0
    %v235 = vmax.f32 %v223, 0.0
    %v236 = vmax.f32 %v224, 0.0
    %v237 = vmax.f32 %v225, 0.0
    %v238 = vmax.f32 %v226, 0.0
    %v239 = vmax.f32 %v227, 0.0
    %v240 = vld [vmem:[%s2] sm:$0xf]
    %v241 = vld [vmem:[%s2 + $0x4] sm:$0xf]
    %v242 = vld [vmem:[%s2 + $0x8] sm:$0xf]
    %v243 = vld [vmem:[%s2 + $0xc] sm:$0xf]
    %v244 = vpack.c.bf16 %v230, %v228
    %v245 = vpack.c.bf16 %v231, %v229
    %v246 = vpack.c.bf16 %v234, %v232
    %v247 = vpack.c.bf16 %v235, %v233
    %v248 = vpack.c.bf16 %v238, %v236
    %v249 = vpack.c.bf16 %v239, %v237
    %v250 = vld [vmem:[%s3] sm:$0xff]
    %v251 = vld [vmem:[%s3 + $0x8] sm:$0xff]
    %v252 = vld [vmem:[%s3 + $0x10] sm:$0xff]
    %v253 = vld [vmem:[%s3 + $0x18] sm:$0xff]
    %255 = vset.pattern.permute.xlu0 0
    %256 = vperm.xlu0 %255, %v250
    %v257 = vpop.permute.xlu0 %256
    %260 = vset.pattern.permute.xlu0 0
    %261 = vperm.xlu0 %260, %v251
    %v262 = vpop.permute.xlu0 %261
    %265 = vset.pattern.permute.xlu0 0
    %266 = vperm.xlu0 %265, %v252
    %v267 = vpop.permute.xlu0 %266
    %270 = vset.pattern.permute.xlu0 0
    %271 = vperm.xlu0 %270, %v253
    %v272 = vpop.permute.xlu0 %271
    %v278 = vunpack.c.l.b16 %v240
    %v279 = vunpack.c.l.b16 %v241
    %v280 = vunpack.c.l.b16 %v242
    %v281 = vunpack.c.l.b16 %v243
    %v282 = vpack.c.b16 %v279, %v278
    %v283 = vpack.c.b16 %v281, %v280
    %vm284 = vcmask 392192
    %v286 = vsel %vm284, %v282, 0
    %v289 = vsel %vm284, %v283, 0
    %291 = vmatprep.subr.bf16.mxu0 0
    %292 = vmatpush1.bf16.msra.mxu0 0
    %293 = vmatprep.subr.bf16.mxu0 0
    %294 = vmatpush1.bf16.msra.mxu0 0
    %295 = vmatprep.subr.bf16.mxu0 0
    %296 = vmatpush1.bf16.msra.mxu0 0
    %297 = vmatprep.subr.bf16.mxu0 0
    %298 = vmatpush1.bf16.msra.mxu0 0
    %299 = vmatprep.subr.bf16.mxu0 0
    %300 = vmatpush1.bf16.msra.mxu0 0
    %301 = vmatprep.subr.bf16.mxu0 %v249
    %302 = vmatpush1.bf16.msra.mxu0 %v248
    %303 = vmatprep.subr.bf16.mxu0 %v247
    %304 = vmatpush1.bf16.msra.mxu0 %v246
    %305 = vmatprep.subr.bf16.mxu0 %v245
    %306 = vmatpush1.bf16.msra.mxu0 %v244
    %307 = vmatprep.subr.bf16.mxu0 0
    %308 = vmatpush2.bf16.msra.mxu0 0
    %309 = vmatprep.subr.bf16.mxu0 0
    %310 = vmatpush2.bf16.msra.mxu0 0
    %311 = vmatprep.subr.bf16.mxu0 0
    %312 = vmatpush2.bf16.msra.mxu0 0
    %313 = vmatprep.subr.bf16.mxu0 0
    %314 = vmatpush2.bf16.msra.mxu0 0
    %315 = vmatprep.subr.bf16.mxu0 0
    %316 = vmatpush2.bf16.msra.mxu0 0
    %317 = vmatprep.subr.bf16.mxu0 0
    %318 = vmatpush2.bf16.msra.mxu0 0
    %319 = vmatprep.subr.bf16.mxu0 0
    %320 = vmatpush2.bf16.msra.mxu0 0
    %321 = vmatprep.subr.bf16.mxu0 0
    %322 = vmatpush2.bf16.msra.mxu0 0
    %323 = vmatprep.mubr.bf16.mxu0 0
    %324 = vmatmul.mubr.bf16.gmra.mxu0 %v286
    %v325 = vpop.f32.mrf.mxu0
    %v326 = vadd.f32 %v257, %v325
    %v327 = vpop.f32.mrf.mxu0
    %v328 = vadd.f32 %v257, %v327
    %v329 = vpop.f32.mrf.mxu0
    %v330 = vadd.f32 %v262, %v329
    %v331 = vpop.f32.mrf.mxu0
    %v332 = vadd.f32 %v262, %v331
    %333 = vmatprep.mubr.bf16.mxu0 0
    %334 = vmatmul.mubr.bf16.gmra.mxu0 %v289
    %v335 = vpop.f32.mrf.mxu0
    %v336 = vadd.f32 %v267, %v335
    %v337 = vpop.f32.mrf.mxu0
    %v338 = vadd.f32 %v267, %v337
    %v339 = vpop.f32.mrf.mxu0
    %v340 = vadd.f32 %v272, %v339
    %v341 = vpop.f32.mrf.mxu0
    %v342 = vadd.f32 %v272, %v341
    %343 = vdwg.mxu0
    %v344 = vmax.f32 %v326, 0.0
    %v345 = vmax.f32 %v328, 0.0
    %v346 = vmax.f32 %v330, 0.0
    %v347 = vmax.f32 %v332, 0.0
    %v348 = vmax.f32 %v336, 0.0
    %v349 = vmax.f32 %v338, 0.0
    %v350 = vmax.f32 %v340, 0.0
    %v351 = vmax.f32 %v342, 0.0
    %v352 = vld [vmem:[%s4] sm:$0xf]
    %v353 = vld [vmem:[%s4 + $0x4] sm:$0xf]
    %v354 = vld [vmem:[%s4 + $0x8] sm:$0xf]
    %v355 = vld [vmem:[%s4 + $0xc] sm:$0xf]
    %v356 = vpack.c.bf16 %v346, %v344
    %v357 = vpack.c.bf16 %v347, %v345
    %v358 = vpack.c.bf16 %v350, %v348
    %v359 = vpack.c.bf16 %v351, %v349
    %v360 = vld [vmem:[%s5] sm:$0xff]
    %v361 = vld [vmem:[%s5 + $0x8] sm:$0xff]
    %v362 = vld [vmem:[%s5 + $0x10] sm:$0xff]
    %v363 = vld [vmem:[%s5 + $0x18] sm:$0xff]
    %365 = vset.pattern.permute.xlu0 0
    %366 = vperm.xlu0 %365, %v360
    %v367 = vpop.permute.xlu0 %366
    %370 = vset.pattern.permute.xlu0 0
    %371 = vperm.xlu0 %370, %v361
    %v372 = vpop.permute.xlu0 %371
    %375 = vset.pattern.permute.xlu0 0
    %376 = vperm.xlu0 %375, %v362
    %v377 = vpop.permute.xlu0 %376
    %380 = vset.pattern.permute.xlu0 0
    %381 = vperm.xlu0 %380, %v363
    %v382 = vpop.permute.xlu0 %381
    %v388 = vunpack.c.l.b16 %v352
    %v389 = vunpack.c.l.b16 %v353
    %v390 = vunpack.c.l.b16 %v354
    %v391 = vunpack.c.l.b16 %v355
    %v392 = vpack.c.b16 %v389, %v388
    %v393 = vpack.c.b16 %v391, %v390
    %vm394 = vcmask 261120
    %v396 = vsel %vm394, %v392, 0
    %v399 = vsel %vm394, %v393, 0
    %401 = vmatprep.subr.bf16.mxu0 0
    %402 = vmatpush1.bf16.msra.mxu0 0
    %403 = vmatprep.subr.bf16.mxu0 0
    %404 = vmatpush1.bf16.msra.mxu0 0
    %405 = vmatprep.subr.bf16.mxu0 0
    %406 = vmatpush1.bf16.msra.mxu0 0
    %407 = vmatprep.subr.bf16.mxu0 0
    %408 = vmatpush1.bf16.msra.mxu0 0
    %409 = vmatprep.subr.bf16.mxu0 0
    %410 = vmatpush1.bf16.msra.mxu0 0
    %411 = vmatprep.subr.bf16.mxu0 0
    %412 = vmatpush1.bf16.msra.mxu0 0
    %413 = vmatprep.subr.bf16.mxu0 %v359
    %414 = vmatpush1.bf16.msra.mxu0 %v358
    %415 = vmatprep.subr.bf16.mxu0 %v357
    %416 = vmatpush1.bf16.msra.mxu0 %v356
    %417 = vmatprep.subr.bf16.mxu0 0
    %418 = vmatpush2.bf16.msra.mxu0 0
    %419 = vmatprep.subr.bf16.mxu0 0
    %420 = vmatpush2.bf16.msra.mxu0 0
    %421 = vmatprep.subr.bf16.mxu0 0
    %422 = vmatpush2.bf16.msra.mxu0 0
    %423 = vmatprep.subr.bf16.mxu0 0
    %424 = vmatpush2.bf16.msra.mxu0 0
    %425 = vmatprep.subr.bf16.mxu0 0
    %426 = vmatpush2.bf16.msra.mxu0 0
    %427 = vmatprep.subr.bf16.mxu0 0
    %428 = vmatpush2.bf16.msra.mxu0 0
    %429 = vmatprep.subr.bf16.mxu0 0
    %430 = vmatpush2.bf16.msra.mxu0 0
    %431 = vmatprep.subr.bf16.mxu0 0
    %432 = vmatpush2.bf16.msra.mxu0 0
    %433 = vmatprep.mubr.bf16.mxu0 0
    %434 = vmatmul.mubr.bf16.gmra.mxu0 %v396
    %v435 = vpop.f32.mrf.mxu0
    %v436 = vadd.f32 %v367, %v435
    %v437 = vpop.f32.mrf.mxu0
    %v438 = vadd.f32 %v367, %v437
    %v439 = vpop.f32.mrf.mxu0
    %v440 = vadd.f32 %v372, %v439
    %v441 = vpop.f32.mrf.mxu0
    %v442 = vadd.f32 %v372, %v441
    %443 = vmatprep.mubr.bf16.mxu0 0
    %444 = vmatmul.mubr.bf16.gmra.mxu0 %v399
    %v445 = vpop.f32.mrf.mxu0
    %v446 = vadd.f32 %v377, %v445
    %v447 = vpop.f32.mrf.mxu0
    %v448 = vadd.f32 %v377, %v447
    %v449 = vpop.f32.mrf.mxu0
    %v450 = vadd.f32 %v382, %v449
    %v451 = vpop.f32.mrf.mxu0
    %v452 = vadd.f32 %v382, %v451
    %453 = vdwg.mxu0
    %v454 = vmax.f32 %v436, 0.0
    %v455 = vmax.f32 %v438, 0.0
    %v456 = vmax.f32 %v440, 0.0
    %v457 = vmax.f32 %v442, 0.0
    %v458 = vmax.f32 %v446, 0.0
    %v459 = vmax.f32 %v448, 0.0
    %v460 = vmax.f32 %v450, 0.0
    %v461 = vmax.f32 %v452, 0.0
    %v462 = vld [vmem:[%s6] sm:$0xff]
    %v463 = vld [vmem:[%s6 + $0x8] sm:$0xff]
    %v464 = vld [vmem:[%s6 + $0x10] sm:$0xff]
    %v465 = vld [vmem:[%s6 + $0x18] sm:$0xff]
    %467 = vset.pattern.permute.xlu0 0
    %468 = vperm.xlu0 %467, %v462
    %v469 = vpop.permute.xlu0 %468
    %472 = vset.pattern.permute.xlu0 0
    %473 = vperm.xlu0 %472, %v463
    %v474 = vpop.permute.xlu0 %473
    %477 = vset.pattern.permute.xlu0 0
    %478 = vperm.xlu0 %477, %v464
    %v479 = vpop.permute.xlu0 %478
    %482 = vset.pattern.permute.xlu0 0
    %483 = vperm.xlu0 %482, %v465
    %v484 = vpop.permute.xlu0 %483
    %v486 = vmul.f32 %v469, %v454
    %v487 = vmul.f32 %v469, %v455
    %v488 = vmul.f32 %v474, %v456
    %v489 = vmul.f32 %v474, %v457
    %v490 = vmul.f32 %v479, %v458
    %v491 = vmul.f32 %v479, %v459
    %v492 = vmul.f32 %v484, %v460
    %v493 = vmul.f32 %v484, %v461
    %v494 = vadd.f32 %v486, %v488
    %v495 = vadd.f32 %v494, %v490
    %v496 = vadd.f32 %v495, %v492
    %v497 = vrot.slane %v496, 4
    %v498 = vadd.f32 %v496, %v497
    %v499 = vrot.slane %v498, 2
    %v500 = vadd.f32 %v498, %v499
    %v501 = vrot.slane %v500, 1
    %v502 = vadd.f32 %v500, %v501
    %v503 = vadd.f32 %v487, %v489
    %v504 = vadd.f32 %v503, %v491
    %v505 = vadd.f32 %v504, %v493
    %v506 = vrot.slane %v505, 4
    %v507 = vadd.f32 %v505, %v506
    %v508 = vrot.slane %v507, 2
    %v509 = vadd.f32 %v507, %v508
    %v510 = vrot.slane %v509, 1
    %v511 = vadd.f32 %v509, %v510
    %v512 = vld [vmem:[#allocation2] sm:$0x1]
    %514 = vset.pattern.permute.xlu0 0
    %515 = vperm.xlu0 %514, %v512
    %v516 = vpop.permute.xlu0 %515
    %v518 = vlaneseq
    %v519 = vshrl.u32 %v518, 7
    %v520 = vsub.s32 0, %v519
    %v521 = vrot.slane %v516, %v520
    %v522 = vadd.f32 %v502, %v521
    %v523 = vadd.f32 %v511, %v521
    %v526 = vcombine.low %v522, %v523
    %v528 = vunpack.c.l.s4 1966171168
    %v529 = vunpack.c.0.s8 %v528
    %v530 = vlaneseq
    %v531 = vshrl.u32 %v530, 7
    %v532 = vsub.s32 %v529, %v531
    %v533 = vrot.slane %v526, %v532
    %v535 = vunpack.c.l.s4 1966171168
    %v536 = vunpack.c.0.s8 %v535
    %v537 = vlaneseq
    %v538 = vshrl.u32 %v537, 7
    %v539 = vsub.s32 %v536, %v538
    %v540 = vrot.slane %v533, %v539
    %v542 = vlaneseq
    %vm543 = vcmp.ge.s32.totalorder %v542, 0
    %vm544 = vcmp.lt.s32.totalorder %v542, 256
    %vm545 = vmand %vm543, %vm544
    %546 = vst.msk [vmem:[#allocation3] sm:$0x3] %vm545, %v540
    // Predicated region
    $region38: #{low_dim_mlp_forward.2} parent=1 // pred_check
      _
    $region39: #{low_dim_mlp_forward.2} parent=1 // pred_check_branch
      %548 = sbr.rel (0) target = $region41
    $region40: #{low_dim_mlp_forward.2} parent=1 // pred_region
      %s550 = ssub.s32 32, 32
      %551 = vsyncadd [#allocation4], %s550
      %s553 = sshll.u32 [#allocation3], 4
      %s554 = int_to_ptr.vmem [resolvable:$true] %s553
      %556 = dma.vmem_to_hbm [thread:$0]  %s554, 32, %s9, [#allocation4]
    $region41: #{low_dim_mlp_forward.2} parent=1 // pred_fallthru
      _
    // Predicated region
    $region42: #{low_dim_mlp_forward.2} parent=1 // pred_check
      _
    $region43: #{low_dim_mlp_forward.2} parent=1 // pred_check_branch
      %558 = sbr.rel (0) target = $region45
    $region44: #{low_dim_mlp_forward.2} parent=1 // pred_region
      %559 = dma.done [#allocation4], 32
    $region45: #{low_dim_mlp_forward.2} parent=1 // pred_fallthru
      _
    %560 = vsyncpa [#allocation4], 1

</llo_original>
